<compile_context>
chip_gen: v7x
topology: tpu7x:2x2x1
jax: 0.10.0
libtpu: 0.0.40
codegen_flags: <defaults>
</compile_context>

<pallas_src>
import functools

import numpy as np
import jax
import jax.numpy as jnp
from jax import lax
from jax.experimental import pallas as pl
from jax.experimental.pallas import tpu as pltpu


# ----------------------------------------------------------------------------
# Kernel: one grid step processes `bt` images, each laid out as (C, HWp).
# ----------------------------------------------------------------------------
def aff_kernel(x_ref, r_ref,
               w1l_ref, t1l_ref, w2l_ref,
               w1g_ref, t1g_ref, w2g_ref,
               t2_ref, o_ref, *, bt, inv_hw):
    # Grid-invariant parameters (block index is constant, so Pallas skips the
    # re-DMA on subsequent steps).
    w1l = w1l_ref[...]   # (Ci, C)   BN1-scaled conv1 weight (local)
    t1l = t1l_ref[...]   # (Ci, 1)   folded bias+BN1 shift   (local)
    w2l = w2l_ref[...]   # (C, Ci)   BN2-scaled conv2 weight (local)
    w1g = w1g_ref[...]   # (C, Ci)   transposed, BN1g-scaled conv1 weight (global)
    t1g = t1g_ref[...]   # (1, Ci)
    w2g = w2g_ref[...]   # (C, Ci)   BN2g-scaled conv2 weight (global)
    t2 = t2_ref[...]     # (C, 1)    merged local+global output BN shift

    def body(b, carry):
        x = x_ref[b].astype(jnp.float32)      # (C, HWp)
        res = r_ref[b].astype(jnp.float32)    # (C, HWp)
        xa = x + res

        # ---- local attention branch: 1x1 conv == channel-mixing matmul ----
        hl = jnp.dot(w1l, xa, preferred_element_type=jnp.float32)   # (Ci, HWp)
        hl = jnp.maximum(hl + t1l, 0.0)                             # BN + ReLU
        xl = jnp.dot(w2l, hl, preferred_element_type=jnp.float32)   # (C, HWp)

        # ---- global attention branch (VPU broadcast-mul + reductions) ----
        # Padded lanes are zero, so the sum is exact; divide by the true HW.
        pooled = jnp.sum(xa, axis=1, keepdims=True) * inv_hw        # (C, 1)
        hg = jnp.sum(w1g * pooled, axis=0, keepdims=True) + t1g     # (1, Ci)
        hg = jnp.maximum(hg, 0.0)
        xg = jnp.sum(w2g * hg, axis=1, keepdims=True)               # (C, 1)

        # ---- fusion:  2*x*wei + 2*res*(1-wei) == 2*(res + (x-res)*wei) ----
        z = xl + (xg + t2)
        wei = 0.5 * jnp.tanh(0.5 * z) + 0.5    # == sigmoid(z), EUP tanh
        o_ref[b] = (2.0 * (res + (x - res) * wei)).astype(o_ref.dtype)
        return carry

    lax.fori_loop(0, bt, body, 0)


# ----------------------------------------------------------------------------
# Wrapper
# ----------------------------------------------------------------------------
def _divisors_desc(n):
    return [d for d in range(n, 0, -1) if n % d == 0]


def aff_forward(x_nchw, residual_nchw, params, bt=None):
    N, C, H, W = x_nchw.shape
    HW = H * W
    HWp = ((HW + 127) // 128) * 128            # lane-dense padding target

    # Preserve the input dtype for HBM I/O (bf16 in -> bf16 out); all in-kernel
    # math is f32.
    in_dtype = x_nchw.dtype
    x = x_nchw.reshape(N, C, HW)
    r = residual_nchw.astype(in_dtype).reshape(N, C, HW)
    if HWp != HW:
        pad = ((0, 0), (0, 0), (0, HWp - HW))
        x = jnp.pad(x, pad)
        r = jnp.pad(r, pad)

    # Per-generation VMEM budget: <= 3/4 of physical capacity, never above
    # 96 MiB (v5e/v6e) and ~48 MiB on v7x's 64 MiB VMEM.
    try:
        info = pltpu.get_tpu_info()
        vmem_cap = int(getattr(info, "vmem_capacity_bytes", 64 << 20))
    except Exception:  # pragma: no cover - conservative fallback
        vmem_cap = 64 << 20
    vmem_budget = int(min((vmem_cap * 3) // 4, 96 << 20))

    itemsize = jnp.dtype(in_dtype).itemsize
    per_img_tile = C * HWp * itemsize                 # one image, one buffer
    inter_reserve = 6 * C * HWp * 4 + (1 << 20)       # f32 intermediates + slack

    if bt is None:
        # x, r, out each get 2 pipeline buffers -> 6 tiles resident.
        # Keep the grid length >= 2 (bt <= N//2) so v7x can split across TCs.
        cap = max(1, N // 2)
        bt = 1
        for cand in _divisors_desc(N):
            if cand <= cap and 6 * cand * per_img_tile + inter_reserve <= vmem_budget:
                bt = cand
                break
    # TODO(synk): if a single (C, HWp) image tile plus intermediates ever
    # exceeds the VMEM budget (very large feature maps), add a second grid
    # axis that tiles HW in 512-1024-lane blocks.

    img_spec = pl.BlockSpec((bt, C, HWp), lambda i: (i, 0, 0))

    def const_spec(arr):                      # all params are 2-D, full-block
        return pl.BlockSpec(arr.shape, lambda i: (0, 0))

    keys = ("w1l", "t1l", "w2l", "w1g", "t1g", "w2g", "t2")
    p = {k: params[k].astype(jnp.float32) for k in keys}

    out = pl.pallas_call(
        functools.partial(aff_kernel, bt=bt, inv_hw=1.0 / float(HW)),
        out_shape=jax.ShapeDtypeStruct((N, C, HWp), in_dtype),
        grid_spec=pltpu.PrefetchScalarGridSpec(
            num_scalar_prefetch=0,
            grid=(N // bt,),
            in_specs=[img_spec, img_spec] + [const_spec(p[k]) for k in keys],
            out_specs=img_spec,
        ),
        compiler_params=pltpu.CompilerParams(
            dimension_semantics=("parallel",),
            vmem_limit_bytes=vmem_budget,
        ),
    )(x, r, *(p[k] for k in keys))

    if HWp != HW:
        out = out[:, :, :HW]
    return out.reshape(N, C, H, W)


# ----------------------------------------------------------------------------
# Parameters: synthetic PyTorch-shaped raw params + host-side BN folding
# ----------------------------------------------------------------------------
def make_aff_params(channels=64, r=4, seed=0):
    """Deterministic synthetic params in the PyTorch module's natural shapes
    (conv weight (cout, cin), conv bias, BN gamma/beta/running_mean/var)."""
    inter = channels // r
    keys = iter(jax.random.split(jax.random.PRNGKey(seed), 24))

    def conv(cout, cin):
        w = 0.1 * jax.random.normal(next(keys), (cout, cin), jnp.float32)
        b = 0.05 * jax.random.normal(next(keys), (cout,), jnp.float32)
        return w, b

    def bn(c):
        gamma = 1.0 + 0.1 * jax.random.normal(next(keys), (c,), jnp.float32)
        beta = 0.1 * jax.random.normal(next(keys), (c,), jnp.float32)
        mean = 0.1 * jax.random.normal(next(keys), (c,), jnp.float32)
        var = jnp.abs(jax.random.normal(next(keys), (c,), jnp.float32)) + 0.5
        return gamma, beta, mean, var

    raw = {}
    raw["l_w1"], raw["l_b1"] = conv(inter, channels)
    raw["l_bn1"] = bn(inter)
    raw["l_w2"], raw["l_b2"] = conv(channels, inter)
    raw["l_bn2"] = bn(channels)
    raw["g_w1"], raw["g_b1"] = conv(inter, channels)
    raw["g_bn1"] = bn(inter)
    raw["g_w2"], raw["g_b2"] = conv(channels, inter)
    raw["g_bn2"] = bn(channels)
    return raw


def fold_params(raw, eps=1e-5):
    """Fold conv bias + eval-mode BN into the conv weights (scale) and shift
    vectors, in the orientations the kernel consumes.  The two final shift
    vectors are merged into a single t2 (applied once before the sigmoid)."""

    def scale_shift(bias, bn_params):
        gamma, beta, mean, var = bn_params
        s = gamma / jnp.sqrt(var + eps)
        t = beta + s * (bias - mean)
        return s, t

    s1l, t1l = scale_shift(raw["l_b1"], raw["l_bn1"])   # (Ci,)
    s2l, t2l = scale_shift(raw["l_b2"], raw["l_bn2"])   # (C,)
    s1g, t1g = scale_shift(raw["g_b1"], raw["g_bn1"])   # (Ci,)
    s2g, t2g = scale_shift(raw["g_b2"], raw["g_bn2"])   # (C,)

    p = {}
    # Local branch: feature tiles are (C, HW); matmuls are W @ feature.
    p["w1l"] = raw["l_w1"] * s1l[:, None]    # (Ci, C)
    p["t1l"] = t1l[:, None]                  # (Ci, 1)
    p["w2l"] = raw["l_w2"] * s2l[:, None]    # (C, Ci)
    # Global branch: VPU broadcast+reduce formulation, both weights as (C, Ci).
    p["w1g"] = raw["g_w1"].T * s1g[None, :]  # (C, Ci)
    p["t1g"] = t1g[None, :]                  # (1, Ci)
    p["w2g"] = raw["g_w2"] * s2g[:, None]    # (C, Ci)
    # Merged output shifts (local BN2 + global BN2g), added before sigmoid.
    p["t2"] = (t2l + t2g)[:, None]           # (C, 1)
    return p


# ----------------------------------------------------------------------------
# Pure-JAX reference on the raw (unfolded) params in NCHW layout — checks both
# the BN folding and the kernel.
# ----------------------------------------------------------------------------
def aff_reference(x, r, raw, eps=1e-5):
    def conv1x1(t, w, b):
        return jnp.einsum('oc,nchw->nohw', w, t) + b[None, :, None, None]

    def bn(t, p):
        gamma, beta, mean, var = p
        s = gamma / jnp.sqrt(var + eps)
        return (t - mean[None, :, None, None]) * s[None, :, None, None] \
            + beta[None, :, None, None]

    xa = x + r
    xl = bn(conv1x1(jax.nn.relu(bn(conv1x1(xa, raw["l_w1"], raw["l_b1"]),
                                   raw["l_bn1"])),
                    raw["l_w2"], raw["l_b2"]),
            raw["l_bn2"])
    pooled = jnp.mean(xa, axis=(2, 3), keepdims=True)
    xg = bn(conv1x1(jax.nn.relu(bn(conv1x1(pooled, raw["g_w1"], raw["g_b1"]),
                                   raw["g_bn1"])),
                    raw["g_w2"], raw["g_b2"]),
            raw["g_bn2"])
    wei = jax.nn.sigmoid(xl + xg)
    return 2.0 * x * wei + 2.0 * r * (1.0 - wei)


if __name__ == "__main__":
    C = 64
    raw_params = make_aff_params(channels=C, r=4, seed=0)
    kernel_params = fold_params(raw_params)

    key = jax.random.PRNGKey(0)

    # --- Test 1: f32, lane-aligned HW (16*16 = 256) ------------------------
    k1, k2, key = jax.random.split(key, 3)
    x1 = jax.random.normal(k1, (2, C, 16, 16), jnp.float32)
    r1 = jax.random.normal(k2, (2, C, 16, 16), jnp.float32)
    out1 = jax.block_until_ready(aff_forward(x1, r1, kernel_params))
    ref1 = aff_reference(x1, r1, raw_params)
    assert out1.shape == x1.shape
    np.testing.assert_allclose(np.asarray(out1), np.asarray(ref1),
                               rtol=2e-3, atol=2e-3)

    # --- Test 2: f32, non-128-aligned HW (14*14 = 196 -> padded to 256) ----
    k1, k2, key = jax.random.split(key, 3)
    x2 = jax.random.normal(k1, (2, C, 14, 14), jnp.float32)
    r2 = jax.random.normal(k2, (2, C, 14, 14), jnp.float32)
    out2 = jax.block_until_ready(aff_forward(x2, r2, kernel_params))
    ref2 = aff_reference(x2, r2, raw_params)
    assert out2.shape == x2.shape
    np.testing.assert_allclose(np.asarray(out2), np.asarray(ref2),
                               rtol=2e-3, atol=2e-3)

    # --- Test 3: bf16 HBM I/O (f32 math in-kernel), loose tolerance --------
    x3 = x1.astype(jnp.bfloat16)
    r3 = r1.astype(jnp.bfloat16)
    out3 = jax.block_until_ready(aff_forward(x3, r3, kernel_params))
    assert out3.dtype == jnp.bfloat16 and out3.shape == x3.shape
    ref3 = aff_reference(x3.astype(jnp.float32), r3.astype(jnp.float32),
                         raw_params)
    np.testing.assert_allclose(np.asarray(out3.astype(jnp.float32)),
                               np.asarray(ref3), rtol=5e-2, atol=5e-2)

    print("KERNEL_OK")
</pallas_src>

<mosaic_0001>
module attributes {stable_mosaic.version = 11 : i64} {
  func.func @aff_kernel(%arg0: i32, %arg1: memref<1x64x256xf32, #tpu.memory_space<vmem>>, %arg2: memref<1x64x256xf32, #tpu.memory_space<vmem>>, %arg3: memref<16x64xf32, #tpu.memory_space<vmem>>, %arg4: memref<16x1xf32, #tpu.memory_space<vmem>>, %arg5: memref<64x16xf32, #tpu.memory_space<vmem>>, %arg6: memref<64x16xf32, #tpu.memory_space<vmem>>, %arg7: memref<1x16xf32, #tpu.memory_space<vmem>>, %arg8: memref<64x16xf32, #tpu.memory_space<vmem>>, %arg9: memref<64x1xf32, #tpu.memory_space<vmem>>, %arg10: memref<1x64x256xf32, #tpu.memory_space<vmem>>) attributes {dimension_semantics = [#tpu.dimension_semantics<parallel>], iteration_bounds = array<i64: 2>, scalar_prefetch = 0 : i64, scratch_operands = 0 : i64, tpu.core_type = #tpu.core_type<tc>, window_params = [{transform_indices = @transform_0, window_bounds = array<i64: 1, 64, 256>}, {transform_indices = @transform_1, window_bounds = array<i64: 1, 64, 256>}, {pipeline_mode = #tpu.pipeline_mode<synchronous>, transform_indices = @transform_2, window_bounds = array<i64: 16, 64>}, {pipeline_mode = #tpu.pipeline_mode<synchronous>, transform_indices = @transform_3, window_bounds = array<i64: 16, 1>}, {pipeline_mode = #tpu.pipeline_mode<synchronous>, transform_indices = @transform_4, window_bounds = array<i64: 64, 16>}, {pipeline_mode = #tpu.pipeline_mode<synchronous>, transform_indices = @transform_5, window_bounds = array<i64: 64, 16>}, {pipeline_mode = #tpu.pipeline_mode<synchronous>, transform_indices = @transform_6, window_bounds = array<i64: 1, 16>}, {pipeline_mode = #tpu.pipeline_mode<synchronous>, transform_indices = @transform_7, window_bounds = array<i64: 64, 16>}, {pipeline_mode = #tpu.pipeline_mode<synchronous>, transform_indices = @transform_8, window_bounds = array<i64: 64, 1>}, {transform_indices = @transform_9, window_bounds = array<i64: 1, 64, 256>}]} {
    %c0 = arith.constant 0 : index
    %c0_0 = arith.constant 0 : index
    %0 = vector.load %arg3[%c0, %c0_0] : memref<16x64xf32, #tpu.memory_space<vmem>>, vector<16x64xf32>
    %c0_1 = arith.constant 0 : index
    %c0_2 = arith.constant 0 : index
    %1 = vector.load %arg4[%c0_1, %c0_2] : memref<16x1xf32, #tpu.memory_space<vmem>>, vector<16x1xf32>
    %c0_3 = arith.constant 0 : index
    %c0_4 = arith.constant 0 : index
    %2 = vector.load %arg5[%c0_3, %c0_4] : memref<64x16xf32, #tpu.memory_space<vmem>>, vector<64x16xf32>
    %c0_5 = arith.constant 0 : index
    %c0_6 = arith.constant 0 : index
    %3 = vector.load %arg6[%c0_5, %c0_6] : memref<64x16xf32, #tpu.memory_space<vmem>>, vector<64x16xf32>
    %c0_7 = arith.constant 0 : index
    %c0_8 = arith.constant 0 : index
    %4 = vector.load %arg7[%c0_7, %c0_8] : memref<1x16xf32, #tpu.memory_space<vmem>>, vector<1x16xf32>
    %c0_9 = arith.constant 0 : index
    %c0_10 = arith.constant 0 : index
    %5 = vector.load %arg8[%c0_9, %c0_10] : memref<64x16xf32, #tpu.memory_space<vmem>>, vector<64x16xf32>
    %c0_11 = arith.constant 0 : index
    %c0_12 = arith.constant 0 : index
    %6 = vector.load %arg9[%c0_11, %c0_12] : memref<64x1xf32, #tpu.memory_space<vmem>>, vector<64x1xf32>
    %c0_i32 = arith.constant 0 : i32
    %7 = arith.index_cast %c0_i32 : i32 to index
    %c0_13 = arith.constant 0 : index
    %c0_14 = arith.constant 0 : index
    %8 = vector.load %arg1[%7, %c0_13, %c0_14] : memref<1x64x256xf32, #tpu.memory_space<vmem>>, vector<1x64x256xf32>
    %9 = vector.shape_cast %8 : vector<1x64x256xf32> to vector<64x256xf32>
    %10 = arith.index_cast %c0_i32 : i32 to index
    %c0_15 = arith.constant 0 : index
    %c0_16 = arith.constant 0 : index
    %11 = vector.load %arg2[%10, %c0_15, %c0_16] : memref<1x64x256xf32, #tpu.memory_space<vmem>>, vector<1x64x256xf32>
    %12 = vector.shape_cast %11 : vector<1x64x256xf32> to vector<64x256xf32>
    %13 = arith.addf %9, %12 : vector<64x256xf32>
    %cst = arith.constant dense<0.000000e+00> : vector<16x256xf32>
    %14 = tpu.matmul %0, %13, %cst {dimension_numbers = #tpu.dot_dimension_numbers<[1], [0], [0], [1], [0, 0, 1, 1], [], []>} : vector<16x64xf32>, vector<64x256xf32>, vector<16x256xf32> -> vector<16x256xf32>
    %15 = vector.broadcast %1 : vector<16x1xf32> to vector<16x256xf32>
    %16 = arith.addf %14, %15 : vector<16x256xf32>
    %cst_17 = arith.constant 0.000000e+00 : f32
    %17 = vector.broadcast %cst_17 : f32 to vector<16x256xf32>
    %18 = arith.maximumf %16, %17 : vector<16x256xf32>
    %cst_18 = arith.constant dense<0.000000e+00> : vector<64x256xf32>
    %19 = tpu.matmul %2, %18, %cst_18 {dimension_numbers = #tpu.dot_dimension_numbers<[1], [0], [0], [1], [0, 0, 1, 1], [], []>} : vector<64x16xf32>, vector<16x256xf32>, vector<64x256xf32> -> vector<64x256xf32>
    %cst_19 = arith.constant dense<0.000000e+00> : vector<64xf32>
    %20 = vector.multi_reduction <add>, %13, %cst_19 [1] : vector<64x256xf32> to vector<64xf32>
    %21 = vector.shape_cast %20 : vector<64xf32> to vector<64x1xf32>
    %cst_20 = arith.constant 3.906250e-03 : f32
    %22 = vector.broadcast %cst_20 : f32 to vector<64x1xf32>
    %23 = arith.mulf %21, %22 : vector<64x1xf32>
    %24 = vector.broadcast %23 : vector<64x1xf32> to vector<64x16xf32>
    %25 = arith.mulf %3, %24 : vector<64x16xf32>
    %cst_21 = arith.constant dense<0.000000e+00> : vector<16xf32>
    %26 = vector.multi_reduction <add>, %25, %cst_21 [0] : vector<64x16xf32> to vector<16xf32>
    %27 = vector.shape_cast %26 : vector<16xf32> to vector<1x16xf32>
    %28 = arith.addf %27, %4 : vector<1x16xf32>
    %cst_22 = arith.constant 0.000000e+00 : f32
    %29 = vector.broadcast %cst_22 : f32 to vector<1x16xf32>
    %30 = arith.maximumf %28, %29 : vector<1x16xf32>
    %31 = vector.broadcast %30 : vector<1x16xf32> to vector<64x16xf32>
    %32 = arith.mulf %5, %31 : vector<64x16xf32>
    %cst_23 = arith.constant dense<0.000000e+00> : vector<64xf32>
    %33 = vector.multi_reduction <add>, %32, %cst_23 [1] : vector<64x16xf32> to vector<64xf32>
    %34 = vector.shape_cast %33 : vector<64xf32> to vector<64x1xf32>
    %35 = arith.addf %34, %6 : vector<64x1xf32>
    %36 = vector.broadcast %35 : vector<64x1xf32> to vector<64x256xf32>
    %37 = arith.addf %19, %36 : vector<64x256xf32>
    %cst_24 = arith.constant 5.000000e-01 : f32
    %38 = vector.broadcast %cst_24 : f32 to vector<64x256xf32>
    %39 = arith.mulf %38, %37 : vector<64x256xf32>
    %40 = math.tanh %39 : vector<64x256xf32>
    %cst_25 = arith.constant 5.000000e-01 : f32
    %41 = vector.broadcast %cst_25 : f32 to vector<64x256xf32>
    %42 = arith.mulf %41, %40 : vector<64x256xf32>
    %cst_26 = arith.constant 5.000000e-01 : f32
    %43 = vector.broadcast %cst_26 : f32 to vector<64x256xf32>
    %44 = arith.addf %42, %43 : vector<64x256xf32>
    %45 = arith.subf %9, %12 : vector<64x256xf32>
    %46 = arith.mulf %45, %44 : vector<64x256xf32>
    %47 = arith.addf %12, %46 : vector<64x256xf32>
    %cst_27 = arith.constant 2.000000e+00 : f32
    %48 = vector.broadcast %cst_27 : f32 to vector<64x256xf32>
    %49 = arith.mulf %48, %47 : vector<64x256xf32>
    %50 = arith.index_cast %c0_i32 : i32 to index
    %c0_28 = arith.constant 0 : index
    %c0_29 = arith.constant 0 : index
    %51 = vector.load %arg10[%50, %c0_28, %c0_29] : memref<1x64x256xf32, #tpu.memory_space<vmem>>, vector<1x64x256xf32>
    %52 = vector.shape_cast %51 : vector<1x64x256xf32> to vector<64x256xf32>
    %53 = vector.shape_cast %49 : vector<64x256xf32> to vector<1x64x256xf32>
    tpu.vector_store %arg10[%50, %c0_28, %c0_29], %53 {strides = array<i32>} : memref<1x64x256xf32, #tpu.memory_space<vmem>>, vector<1x64x256xf32>,
    %c1_i32 = arith.constant 1 : i32
    return
  }
  func.func @transform_0(%arg0: i32) -> (i32, i32, i32) {
    %c0_i32 = arith.constant 0 : i32
    %c0_i32_0 = arith.constant 0 : i32
    %c0_i32_1 = arith.constant 0 : i32
    return %arg0, %c0_i32, %c0_i32_0 : i32, i32, i32
  }
  func.func @transform_1(%arg0: i32) -> (i32, i32, i32) {
    %c0_i32 = arith.constant 0 : i32
    %c0_i32_0 = arith.constant 0 : i32
    %c0_i32_1 = arith.constant 0 : i32
    return %arg0, %c0_i32, %c0_i32_0 : i32, i32, i32
  }
  func.func @transform_2(%arg0: i32) -> (i32, i32) {
    %c0_i32 = arith.constant 0 : i32
    %c0_i32_0 = arith.constant 0 : i32
    %c0_i32_1 = arith.constant 0 : i32
    return %c0_i32, %c0_i32_0 : i32, i32
  }
  func.func @transform_3(%arg0: i32) -> (i32, i32) {
    %c0_i32 = arith.constant 0 : i32
    %c0_i32_0 = arith.constant 0 : i32
    %c0_i32_1 = arith.constant 0 : i32
    return %c0_i32, %c0_i32_0 : i32, i32
  }
  func.func @transform_4(%arg0: i32) -> (i32, i32) {
    %c0_i32 = arith.constant 0 : i32
    %c0_i32_0 = arith.constant 0 : i32
    %c0_i32_1 = arith.constant 0 : i32
    return %c0_i32, %c0_i32_0 : i32, i32
  }
  func.func @transform_5(%arg0: i32) -> (i32, i32) {
    %c0_i32 = arith.constant 0 : i32
    %c0_i32_0 = arith.constant 0 : i32
    %c0_i32_1 = arith.constant 0 : i32
    return %c0_i32, %c0_i32_0 : i32, i32
  }
  func.func @transform_6(%arg0: i32) -> (i32, i32) {
    %c0_i32 = arith.constant 0 : i32
    %c0_i32_0 = arith.constant 0 : i32
    %c0_i32_1 = arith.constant 0 : i32
    return %c0_i32, %c0_i32_0 : i32, i32
  }
  func.func @transform_7(%arg0: i32) -> (i32, i32) {
    %c0_i32 = arith.constant 0 : i32
    %c0_i32_0 = arith.constant 0 : i32
    %c0_i32_1 = arith.constant 0 : i32
    return %c0_i32, %c0_i32_0 : i32, i32
  }
  func.func @transform_8(%arg0: i32) -> (i32, i32) {
    %c0_i32 = arith.constant 0 : i32
    %c0_i32_0 = arith.constant 0 : i32
    %c0_i32_1 = arith.constant 0 : i32
    return %c0_i32, %c0_i32_0 : i32, i32
  }
  func.func @transform_9(%arg0: i32) -> (i32, i32, i32) {
    %c0_i32 = arith.constant 0 : i32
    %c0_i32_0 = arith.constant 0 : i32
    %c0_i32_1 = arith.constant 0 : i32
    return %arg0, %c0_i32, %c0_i32_0 : i32, i32, i32
  }
}

</mosaic_0001>

<llo_original>
// kernel: tpu_custom_call.1
$region0: #{tpu_custom_call.1}
  #allocation0 [shape = 'u32[]', space=smem, size = 0x4, offset = 0x4, fixed_abs, tag = 'smem constant byte address 0x4 - core index']
  #allocation1 [shape = 'u32[144,128]{1,0:T(1,128)}', space=vmem, size = 0x12000, scoped, tag = 'internal scratch']
  %s0 = inlined_call_operand.vmem [shape: f32[2,64,256], index: 0, kind: input, shape index: {}]
  %s1 = inlined_call_operand.hbm [shape: f32[2,64,256], index: 1, kind: input, shape index: {}]
  %s2 = inlined_call_operand.vmem [shape: f32[16,64], index: 2, kind: input, shape index: {}]
  %s3 = inlined_call_operand.vmem [shape: f32[16,1], index: 3, kind: input, shape index: {}]
  %s4 = inlined_call_operand.vmem [shape: f32[64,16], index: 4, kind: input, shape index: {}]
  %s5 = inlined_call_operand.vmem [shape: f32[64,16], index: 5, kind: input, shape index: {}]
  %s6 = inlined_call_operand.vmem [shape: f32[1,16], index: 6, kind: input, shape index: {}]
  %s7 = inlined_call_operand.vmem [shape: f32[64,16], index: 7, kind: input, shape index: {}]
  %s8 = inlined_call_operand.vmem [shape: f32[64,1], index: 8, kind: input, shape index: {}]
  %s9 = inlined_call_operand.hbm [shape: f32[2,64,256], index: 9, kind: output, shape index: {}]
  %s10 = sld [smem:[#allocation0]]
  $region73: #{tpu_custom_call.1} parent=0
    _
  %s12 = ssub.s32 1, %s10
  %s13 = scalar_select 0, %s12, %s10
  $region1: #{tpu_custom_call.1} parent=0
    #allocation2 [shape = 'u8[131072]{0}', space=vmem, size = 0x20000, scoped, tag = 'input window, operand 1']
    #allocation3 [shape = 's32[2]{0}', space=sflag, size = 0x8, scoped, tag = 'scoped memory for tpu_custom_call.1']
    #allocation4 [shape = 's32[2]{0}', space=sflag, size = 0x8, scoped, tag = 'scoped memory for tpu_custom_call.1']
    #allocation5 [shape = 'u8[131072]{0}', space=vmem, size = 0x20000, scoped, tag = 'output window, operand 0']
    %14 = vsyncpa [#allocation3], 0
    %s15 = scalar_lea.sflag [#allocation3], 1
    %16 = vsyncpa %s15, 0
    %17 = vsyncpa [#allocation4], 0
    %s18 = scalar_lea.sflag [#allocation4], 1
    %19 = vsyncpa %s18, 0
    loop: start=0, step=1, limit=4
    $region2: #{tpu_custom_call.1} parent=1 // loop_pre_header
      _
    $region3: #{tpu_custom_call.1} parent=1 // loop_header
      %s21 = sphi 0, %s25
      %p22 = scmp.ge.s32.totalorder %s21, 4
      %s31 = sphi 0, %s33
      %s34 = sphi 0, %s31
      %s35 = sphi 0, %s34
      %s51 = sphi 0, %s35
      %s57 = sphi 0, %s59
      %s60 = sphi 0, %s57
      %s61 = sphi 0, %s60
      %s77 = sphi 0, %s61
      %s81 = sphi 0, %s81
      %s83 = sphi 0, %s81
      %s84 = sphi 0, %s83
      %s98 = sphi 0, %s84
      %s102 = sphi 0, %s102
      %s104 = sphi 0, %s102
      %s105 = sphi 0, %s104
      %s119 = sphi 0, %s105
      %s123 = sphi 0, %s123
      %s125 = sphi 0, %s123
      %s126 = sphi 0, %s125
      %s140 = sphi 0, %s126
      %s144 = sphi 0, %s144
      %s146 = sphi 0, %s144
      %s147 = sphi 0, %s146
      %s161 = sphi 0, %s147
      %s165 = sphi 0, %s165
      %s167 = sphi 0, %s165
      %s168 = sphi 0, %s167
      %s182 = sphi 0, %s168
      %s186 = sphi 0, %s186
      %s188 = sphi 0, %s186
      %s189 = sphi 0, %s188
      %s203 = sphi 0, %s189
      %s207 = sphi 0, %s207
      %s209 = sphi 0, %s207
      %s210 = sphi 0, %s209
      %s224 = sphi 0, %s210
      %s230 = sphi 0, %s232
      %s233 = sphi 0, %s230
      %s234 = sphi 0, %s233
      %s250 = sphi 0, %s234
    $region4: #{tpu_custom_call.1} parent=1 // loop_header_branch
      %24 = sbr.rel (%p22) target = $region8
    $region5: #{tpu_custom_call.1} parent=1 // loop_body
      %s26 = ssub.s32 %s21, 1
      %s27 = ssub.s32 %s21, 2
      %s28 = sadd.s32 %s21, 1
      %s29 = ssub.s32 %s21, %s28
      %p30 = scmp.eq.s32.totalorder %s29, 0
      %s32 = sadd.s32 %s31, 1
      %s33 = scalar_select %p30, %s31, %s32
      %p36 = pneg %p30
      %p37 = scmp.eq.s32.totalorder %s21, 1
      %p38 = por %p36, %p37
      %p39 = scmp.ne.s32.totalorder %s31, %s34
      %p40 = scmp.eq.s32.totalorder %s21, 0
      %p41 = por %p39, %p40
      %p42 = scmp.ne.s32.totalorder %s31, %s34
      %p43 = scmp.eq.s32.totalorder %s26, 1
      %p44 = por %p42, %p43
      %p45 = scmp.ne.s32.totalorder %s34, %s35
      %p46 = scmp.eq.s32.totalorder %s26, 0
      %p47 = por %p45, %p46
      %p48 = scmp.ne.s32.totalorder %s34, %s35
      %p49 = scmp.eq.s32.totalorder %s27, 1
      %p50 = por %p48, %p49
      %p52 = scmp.ne.s32.totalorder %s35, %s51
      %p53 = scmp.eq.s32.totalorder %s27, 0
      %p54 = por %p52, %p53
      %s55 = ssub.s32 %s21, %s28
      %p56 = scmp.eq.s32.totalorder %s55, 0
      %s58 = sadd.s32 %s57, 1
      %s59 = scalar_select %p56, %s57, %s58
      %p62 = pneg %p56
      %p63 = scmp.eq.s32.totalorder %s21, 1
      %p64 = por %p62, %p63
      %p65 = scmp.ne.s32.totalorder %s57, %s60
      %p66 = scmp.eq.s32.totalorder %s21, 0
      %p67 = por %p65, %p66
      %p68 = scmp.ne.s32.totalorder %s57, %s60
      %p69 = scmp.eq.s32.totalorder %s26, 1
      %p70 = por %p68, %p69
      %p71 = scmp.ne.s32.totalorder %s60, %s61
      %p72 = scmp.eq.s32.totalorder %s26, 0
      %p73 = por %p71, %p72
      %p74 = scmp.ne.s32.totalorder %s60, %s61
      %p75 = scmp.eq.s32.totalorder %s27, 1
      %p76 = por %p74, %p75
      %p78 = scmp.ne.s32.totalorder %s61, %s77
      %p79 = scmp.eq.s32.totalorder %s27, 0
      %p80 = por %p78, %p79
      %s82 = sadd.s32 %s81, 1
      %p85 = scmp.eq.s32.totalorder %s21, 1
      %p86 = scmp.ne.s32.totalorder %s81, %s83
      %p87 = scmp.eq.s32.totalorder %s21, 0
      %p88 = por %p86, %p87
      %p89 = scmp.ne.s32.totalorder %s81, %s83
      %p90 = scmp.eq.s32.totalorder %s26, 1
      %p91 = por %p89, %p90
      %p92 = scmp.ne.s32.totalorder %s83, %s84
      %p93 = scmp.eq.s32.totalorder %s26, 0
      %p94 = por %p92, %p93
      %p95 = scmp.ne.s32.totalorder %s83, %s84
      %p96 = scmp.eq.s32.totalorder %s27, 1
      %p97 = por %p95, %p96
      %p99 = scmp.ne.s32.totalorder %s84, %s98
      %p100 = scmp.eq.s32.totalorder %s27, 0
      %p101 = por %p99, %p100
      %s103 = sadd.s32 %s102, 1
      %p106 = scmp.eq.s32.totalorder %s21, 1
      %p107 = scmp.ne.s32.totalorder %s102, %s104
      %p108 = scmp.eq.s32.totalorder %s21, 0
      %p109 = por %p107, %p108
      %p110 = scmp.ne.s32.totalorder %s102, %s104
      %p111 = scmp.eq.s32.totalorder %s26, 1
      %p112 = por %p110, %p111
      %p113 = scmp.ne.s32.totalorder %s104, %s105
      %p114 = scmp.eq.s32.totalorder %s26, 0
      %p115 = por %p113, %p114
      %p116 = scmp.ne.s32.totalorder %s104, %s105
      %p117 = scmp.eq.s32.totalorder %s27, 1
      %p118 = por %p116, %p117
      %p120 = scmp.ne.s32.totalorder %s105, %s119
      %p121 = scmp.eq.s32.totalorder %s27, 0
      %p122 = por %p120, %p121
      %s124 = sadd.s32 %s123, 1
      %p127 = scmp.eq.s32.totalorder %s21, 1
      %p128 = scmp.ne.s32.totalorder %s123, %s125
      %p129 = scmp.eq.s32.totalorder %s21, 0
      %p130 = por %p128, %p129
      %p131 = scmp.ne.s32.totalorder %s123, %s125
      %p132 = scmp.eq.s32.totalorder %s26, 1
      %p133 = por %p131, %p132
      %p134 = scmp.ne.s32.totalorder %s125, %s126
      %p135 = scmp.eq.s32.totalorder %s26, 0
      %p136 = por %p134, %p135
      %p137 = scmp.ne.s32.totalorder %s125, %s126
      %p138 = scmp.eq.s32.totalorder %s27, 1
      %p139 = por %p137, %p138
      %p141 = scmp.ne.s32.totalorder %s126, %s140
      %p142 = scmp.eq.s32.totalorder %s27, 0
      %p143 = por %p141, %p142
      %s145 = sadd.s32 %s144, 1
      %p148 = scmp.eq.s32.totalorder %s21, 1
      %p149 = scmp.ne.s32.totalorder %s144, %s146
      %p150 = scmp.eq.s32.totalorder %s21, 0
      %p151 = por %p149, %p150
      %p152 = scmp.ne.s32.totalorder %s144, %s146
      %p153 = scmp.eq.s32.totalorder %s26, 1
      %p154 = por %p152, %p153
      %p155 = scmp.ne.s32.totalorder %s146, %s147
      %p156 = scmp.eq.s32.totalorder %s26, 0
      %p157 = por %p155, %p156
      %p158 = scmp.ne.s32.totalorder %s146, %s147
      %p159 = scmp.eq.s32.totalorder %s27, 1
      %p160 = por %p158, %p159
      %p162 = scmp.ne.s32.totalorder %s147, %s161
      %p163 = scmp.eq.s32.totalorder %s27, 0
      %p164 = por %p162, %p163
      %s166 = sadd.s32 %s165, 1
      %p169 = scmp.eq.s32.totalorder %s21, 1
      %p170 = scmp.ne.s32.totalorder %s165, %s167
      %p171 = scmp.eq.s32.totalorder %s21, 0
      %p172 = por %p170, %p171
      %p173 = scmp.ne.s32.totalorder %s165, %s167
      %p174 = scmp.eq.s32.totalorder %s26, 1
      %p175 = por %p173, %p174
      %p176 = scmp.ne.s32.totalorder %s167, %s168
      %p177 = scmp.eq.s32.totalorder %s26, 0
      %p178 = por %p176, %p177
      %p179 = scmp.ne.s32.totalorder %s167, %s168
      %p180 = scmp.eq.s32.totalorder %s27, 1
      %p181 = por %p179, %p180
      %p183 = scmp.ne.s32.totalorder %s168, %s182
      %p184 = scmp.eq.s32.totalorder %s27, 0
      %p185 = por %p183, %p184
      %s187 = sadd.s32 %s186, 1
      %p190 = scmp.eq.s32.totalorder %s21, 1
      %p191 = scmp.ne.s32.totalorder %s186, %s188
      %p192 = scmp.eq.s32.totalorder %s21, 0
      %p193 = por %p191, %p192
      %p194 = scmp.ne.s32.totalorder %s186, %s188
      %p195 = scmp.eq.s32.totalorder %s26, 1
      %p196 = por %p194, %p195
      %p197 = scmp.ne.s32.totalorder %s188, %s189
      %p198 = scmp.eq.s32.totalorder %s26, 0
      %p199 = por %p197, %p198
      %p200 = scmp.ne.s32.totalorder %s188, %s189
      %p201 = scmp.eq.s32.totalorder %s27, 1
      %p202 = por %p200, %p201
      %p204 = scmp.ne.s32.totalorder %s189, %s203
      %p205 = scmp.eq.s32.totalorder %s27, 0
      %p206 = por %p204, %p205
      %s208 = sadd.s32 %s207, 1
      %p211 = scmp.eq.s32.totalorder %s21, 1
      %p212 = scmp.ne.s32.totalorder %s207, %s209
      %p213 = scmp.eq.s32.totalorder %s21, 0
      %p214 = por %p212, %p213
      %p215 = scmp.ne.s32.totalorder %s207, %s209
      %p216 = scmp.eq.s32.totalorder %s26, 1
      %p217 = por %p215, %p216
      %p218 = scmp.ne.s32.totalorder %s209, %s210
      %p219 = scmp.eq.s32.totalorder %s26, 0
      %p220 = por %p218, %p219
      %p221 = scmp.ne.s32.totalorder %s209, %s210
      %p222 = scmp.eq.s32.totalorder %s27, 1
      %p223 = por %p221, %p222
      %p225 = scmp.ne.s32.totalorder %s210, %s224
      %p226 = scmp.eq.s32.totalorder %s27, 0
      %p227 = por %p225, %p226
      %s228 = ssub.s32 %s21, %s28
      %p229 = scmp.eq.s32.totalorder %s228, 0
      %s231 = sadd.s32 %s230, 1
      %s232 = scalar_select %p229, %s230, %s231
      %p235 = pneg %p229
      %p236 = scmp.eq.s32.totalorder %s21, 1
      %p237 = por %p235, %p236
      %p238 = scmp.ne.s32.totalorder %s230, %s233
      %p239 = scmp.eq.s32.totalorder %s21, 0
      %p240 = por %p238, %p239
      %p241 = scmp.ne.s32.totalorder %s230, %s233
      %p242 = scmp.eq.s32.totalorder %s26, 1
      %p243 = por %p241, %p242
      %p244 = scmp.ne.s32.totalorder %s233, %s234
      %p245 = scmp.eq.s32.totalorder %s26, 0
      %p246 = por %p244, %p245
      %p247 = scmp.ne.s32.totalorder %s233, %s234
      %p248 = scmp.eq.s32.totalorder %s27, 1
      %p249 = por %p247, %p248
      %p251 = scmp.ne.s32.totalorder %s234, %s250
      %p252 = scmp.eq.s32.totalorder %s27, 0
      %p253 = por %p251, %p252
      %p254 = scmp.le.s32.totalorder 1, %s21
      %p255 = scmp.lt.s32.totalorder %s21, 3
      %p256 = pnand %p254, %p255
      %p257 = pneg %p256
      // Predicated region
      $region9: #{tpu_custom_call.1} parent=5 // pred_check
        _
      $region10: #{tpu_custom_call.1} parent=5 // pred_check_branch
        %259 = sbr.rel (%p256) target = $region12
      $region11: #{tpu_custom_call.1} parent=5 // pred_region
        %s260 = ssub.s32 %s21, 1
        // Predicated region
        $region13: #{tpu_custom_call.1} parent=11 // pred_check
          %p261 = pneg %p94
        $region14: #{tpu_custom_call.1} parent=11 // pred_check_branch
          %263 = sbr.rel (%p261) target = $region16
        $region15: #{tpu_custom_call.1} parent=11 // pred_region
          _
        $region16: #{tpu_custom_call.1} parent=11 // pred_fallthru
          _
        // Predicated region
        $region17: #{tpu_custom_call.1} parent=11 // pred_check
          %p264 = pneg %p115
        $region18: #{tpu_custom_call.1} parent=11 // pred_check_branch
          %266 = sbr.rel (%p264) target = $region20
        $region19: #{tpu_custom_call.1} parent=11 // pred_region
          _
        $region20: #{tpu_custom_call.1} parent=11 // pred_fallthru
          _
        // Predicated region
        $region21: #{tpu_custom_call.1} parent=11 // pred_check
          %p267 = pneg %p136
        $region22: #{tpu_custom_call.1} parent=11 // pred_check_branch
          %269 = sbr.rel (%p267) target = $region24
        $region23: #{tpu_custom_call.1} parent=11 // pred_region
          _
        $region24: #{tpu_custom_call.1} parent=11 // pred_fallthru
          _
        // Predicated region
        $region25: #{tpu_custom_call.1} parent=11 // pred_check
          %p270 = pneg %p157
        $region26: #{tpu_custom_call.1} parent=11 // pred_check_branch
          %272 = sbr.rel (%p270) target = $region28
        $region27: #{tpu_custom_call.1} parent=11 // pred_region
          _
        $region28: #{tpu_custom_call.1} parent=11 // pred_fallthru
          _
        // Predicated region
        $region29: #{tpu_custom_call.1} parent=11 // pred_check
          %p273 = pneg %p178
        $region30: #{tpu_custom_call.1} parent=11 // pred_check_branch
          %275 = sbr.rel (%p273) target = $region32
        $region31: #{tpu_custom_call.1} parent=11 // pred_region
          _
        $region32: #{tpu_custom_call.1} parent=11 // pred_fallthru
          _
        // Predicated region
        $region33: #{tpu_custom_call.1} parent=11 // pred_check
          %p276 = pneg %p199
        $region34: #{tpu_custom_call.1} parent=11 // pred_check_branch
          %278 = sbr.rel (%p276) target = $region36
        $region35: #{tpu_custom_call.1} parent=11 // pred_region
          _
        $region36: #{tpu_custom_call.1} parent=11 // pred_fallthru
          _
        // Predicated region
        $region37: #{tpu_custom_call.1} parent=11 // pred_check
          %p279 = pneg %p220
        $region38: #{tpu_custom_call.1} parent=11 // pred_check_branch
          %281 = sbr.rel (%p279) target = $region40
        $region39: #{tpu_custom_call.1} parent=11 // pred_region
          _
        $region40: #{tpu_custom_call.1} parent=11 // pred_fallthru
          _
      $region12: #{tpu_custom_call.1} parent=5 // pred_fallthru
        _
      %p282 = scmp.lt.s32.totalorder %s21, 2
      // Predicated region
      $region41: #{tpu_custom_call.1} parent=5 // pred_check
        %p283 = pneg %p282
      $region42: #{tpu_custom_call.1} parent=5 // pred_check_branch
        %285 = sbr.rel (%p283) target = $region44
      $region43: #{tpu_custom_call.1} parent=5 // pred_region
        // Predicated region
        $region45: #{tpu_custom_call.1} parent=43 // pred_check
          %p286 = pneg %p41
        $region46: #{tpu_custom_call.1} parent=43 // pred_check_branch
          %288 = sbr.rel (%p286) target = $region48
        $region47: #{tpu_custom_call.1} parent=43 // pred_region
          %p289 = scmp.lt.s32.totalorder %s21, 1
          %s290 = scalar_select %p289, %s21, 1
          %s291 = smul.addr %s290, 16
          %s292 = smul.addr %s291, 8
          %s293 = scalar_lea.vmem %s0, %s292
        $region48: #{tpu_custom_call.1} parent=43 // pred_fallthru
          _
        // Predicated region
        $region49: #{tpu_custom_call.1} parent=43 // pred_check
          %p294 = pneg %p67
        $region50: #{tpu_custom_call.1} parent=43 // pred_check_branch
          %296 = sbr.rel (%p294) target = $region52
        $region51: #{tpu_custom_call.1} parent=43 // pred_region
          %s297 = sand.u32 %s57, 1
          %s298 = scalar_lea.sflag [#allocation3], %s297
          %s299 = sand.u32 %s57, 1
          %s300 = smul.addr %s299, 128
          %s301 = scalar_lea.vmem [#allocation2], %s300
          %s303 = ssub.s32 2048, 2048
          %304 = vsyncadd %s298, %s303
          %s305 = smul.addr %s21, 16
          %s306 = smul.addr %s305, 128
          %s307 = scalar_lea.hbm %s1, %s306
          %s308 = sshll.u32 %s301, 4
          %s309 = int_to_ptr.vmem [resolvable:$true] %s308
          %314 = dma.hbm_to_vmem [thread:$0]  %s307, 2048, %s309, %s298, 256, 256, 16
        $region52: #{tpu_custom_call.1} parent=43 // pred_fallthru
          _
      $region44: #{tpu_custom_call.1} parent=5 // pred_fallthru
        _
      %p315 = scmp.le.s32.totalorder 1, %s21
      %p316 = scmp.lt.s32.totalorder %s21, 3
      %p317 = pnand %p315, %p316
      %p318 = pneg %p317
      // Predicated region
      $region53: #{tpu_custom_call.1} parent=5 // pred_check
        _
      $region54: #{tpu_custom_call.1} parent=5 // pred_check_branch
        %320 = sbr.rel (%p317) target = $region56
      $region55: #{tpu_custom_call.1} parent=5 // pred_region
        %s321 = ssub.s32 %s21, 1
        %s322 = sand.u32 %s60, 1
        %s323 = scalar_lea.sflag [#allocation3], %s322
        %s324 = sand.u32 %s60, 1
        %s325 = smul.addr %s324, 128
        %s326 = scalar_lea.vmem [#allocation2], %s325
        // Predicated region
        $region57: #{tpu_custom_call.1} parent=55 // pred_check
          %p327 = pneg %p73
        $region58: #{tpu_custom_call.1} parent=55 // pred_check_branch
          %329 = sbr.rel (%p327) target = $region60
        $region59: #{tpu_custom_call.1} parent=55 // pred_region
          %330 = dma.done %s323, 2048
        $region60: #{tpu_custom_call.1} parent=55 // pred_fallthru
          _
        %p331 = scmp.lt.s32.totalorder %s26, 1
        %s332 = scalar_select %p331, %s26, 1
        %s333 = smul.addr %s332, 16
        %s334 = smul.addr %s333, 8
        %s335 = scalar_lea.vmem %s0, %s334
        %p336 = pneg %p47
        %p337 = pneg %p44
        %s338 = sand.u32 %s60, 1
        %s339 = scalar_lea.sflag [#allocation3], %s338
        %s340 = sand.u32 %s60, 1
        %s341 = smul.addr %s340, 128
        %s342 = scalar_lea.vmem [#allocation2], %s341
        %p343 = pneg %p73
        %p344 = pneg %p70
        %p345 = pneg %p94
        %p346 = pneg %p91
        %p347 = pneg %p115
        %p348 = pneg %p112
        %p349 = pneg %p136
        %p350 = pneg %p133
        %p351 = pneg %p157
        %p352 = pneg %p154
        %p353 = pneg %p178
        %p354 = pneg %p175
        %p355 = pneg %p199
        %p356 = pneg %p196
        %p357 = pneg %p220
        %p358 = pneg %p217
        %p359 = pneg %p246
        %p360 = pneg %p243
        %s361 = sand.u32 %s233, 1
        %s362 = scalar_lea.sflag [#allocation4], %s361
        %s363 = sand.u32 %s233, 1
        %s364 = smul.addr %s363, 128
        %s365 = scalar_lea.vmem [#allocation5], %s364
        %p366 = scmp.lt.s32.totalorder %s26, 1
        %s367 = scalar_select %p366, %s26, 1
        %s368 = smul.addr %s367, 16
        %s369 = smul.addr %s368, 8
        %s370 = scalar_lea.vmem %s0, %s369
        %v371 = vld [vmem:[%s2] sm:$0xff]
        %v372 = vld [vmem:[%s2 + $0x8] sm:$0xff]
        %v373 = vld [vmem:[%s3] sm:$0xff]
        %v374 = vld [vmem:[%s3 + $0x8] sm:$0xff]
        %v375 = vld [vmem:[%s4] sm:$0xff]
        %v376 = vld [vmem:[%s4 + $0x8] sm:$0xff]
        %v377 = vld [vmem:[%s4 + $0x10] sm:$0xff]
        %v378 = vld [vmem:[%s4 + $0x18] sm:$0xff]
        %v379 = vld [vmem:[%s4 + $0x20] sm:$0xff]
        %v380 = vld [vmem:[%s4 + $0x28] sm:$0xff]
        %v381 = vld [vmem:[%s4 + $0x30] sm:$0xff]
        %v382 = vld [vmem:[%s4 + $0x38] sm:$0xff]
        %v383 = vld [vmem:[%s5] sm:$0xff]
        %v384 = vld [vmem:[%s5 + $0x8] sm:$0xff]
        %v385 = vld [vmem:[%s5 + $0x10] sm:$0xff]
        %v386 = vld [vmem:[%s5 + $0x18] sm:$0xff]
        %v387 = vld [vmem:[%s5 + $0x20] sm:$0xff]
        %v388 = vld [vmem:[%s5 + $0x28] sm:$0xff]
        %v389 = vld [vmem:[%s5 + $0x30] sm:$0xff]
        %v390 = vld [vmem:[%s5 + $0x38] sm:$0xff]
        %v391 = vld [vmem:[%s6] sm:$0x1]
        %v392 = vld [vmem:[%s7] sm:$0xff]
        %v393 = vld [vmem:[%s7 + $0x8] sm:$0xff]
        %v394 = vld [vmem:[%s7 + $0x10] sm:$0xff]
        %v395 = vld [vmem:[%s7 + $0x18] sm:$0xff]
        %v396 = vld [vmem:[%s7 + $0x20] sm:$0xff]
        %v397 = vld [vmem:[%s7 + $0x28] sm:$0xff]
        %v398 = vld [vmem:[%s7 + $0x30] sm:$0xff]
        %v399 = vld [vmem:[%s7 + $0x38] sm:$0xff]
        %v400 = vld [vmem:[%s8] sm:$0xff]
        %v401 = vld [vmem:[%s8 + $0x8] sm:$0xff]
        %v402 = vld [vmem:[%s8 + $0x10] sm:$0xff]
        %v403 = vld [vmem:[%s8 + $0x18] sm:$0xff]
        %v404 = vld [vmem:[%s8 + $0x20] sm:$0xff]
        %v405 = vld [vmem:[%s8 + $0x28] sm:$0xff]
        %v406 = vld [vmem:[%s8 + $0x30] sm:$0xff]
        %v407 = vld [vmem:[%s8 + $0x38] sm:$0xff]
        %v408 = vld [vmem:[%s370] sm:$0xff]
        %v409 = vld [vmem:[%s370 + $0x8] sm:$0xff]
        %v410 = vld [vmem:[%s370 + $0x10] sm:$0xff]
        %v411 = vld [vmem:[%s370 + $0x18] sm:$0xff]
        %v412 = vld [vmem:[%s370 + $0x20] sm:$0xff]
        %v413 = vld [vmem:[%s370 + $0x28] sm:$0xff]
        %v414 = vld [vmem:[%s370 + $0x30] sm:$0xff]
        %v415 = vld [vmem:[%s370 + $0x38] sm:$0xff]
        %v416 = vld [vmem:[%s370 + $0x40] sm:$0xff]
        %v417 = vld [vmem:[%s370 + $0x48] sm:$0xff]
        %v418 = vld [vmem:[%s370 + $0x50] sm:$0xff]
        %v419 = vld [vmem:[%s370 + $0x58] sm:$0xff]
        %v420 = vld [vmem:[%s370 + $0x60] sm:$0xff]
        %v421 = vld [vmem:[%s370 + $0x68] sm:$0xff]
        %v422 = vld [vmem:[%s370 + $0x70] sm:$0xff]
        %v423 = vld [vmem:[%s370 + $0x78] sm:$0xff]
        %v424 = vld [vmem:[%s326] sm:$0xff]
        %v425 = vld [vmem:[%s326 + $0x8] sm:$0xff]
        %v426 = vld [vmem:[%s326 + $0x10] sm:$0xff]
        %v427 = vld [vmem:[%s326 + $0x18] sm:$0xff]
        %v428 = vld [vmem:[%s326 + $0x20] sm:$0xff]
        %v429 = vld [vmem:[%s326 + $0x28] sm:$0xff]
        %v430 = vld [vmem:[%s326 + $0x30] sm:$0xff]
        %v431 = vld [vmem:[%s326 + $0x38] sm:$0xff]
        %v432 = vld [vmem:[%s326 + $0x40] sm:$0xff]
        %v433 = vld [vmem:[%s326 + $0x48] sm:$0xff]
        %v434 = vld [vmem:[%s326 + $0x50] sm:$0xff]
        %v435 = vld [vmem:[%s326 + $0x58] sm:$0xff]
        %v436 = vld [vmem:[%s326 + $0x60] sm:$0xff]
        %v437 = vld [vmem:[%s326 + $0x68] sm:$0xff]
        %v438 = vld [vmem:[%s326 + $0x70] sm:$0xff]
        %v439 = vld [vmem:[%s326 + $0x78] sm:$0xff]
        %v440 = vadd.f32 %v408, %v424
        %v441 = vadd.f32 %v409, %v425
        %v442 = vadd.f32 %v410, %v426
        %v443 = vadd.f32 %v411, %v427
        %v444 = vadd.f32 %v412, %v428
        %v445 = vadd.f32 %v413, %v429
        %v446 = vadd.f32 %v414, %v430
        %v447 = vadd.f32 %v415, %v431
        %v448 = vadd.f32 %v416, %v432
        %v449 = vadd.f32 %v417, %v433
        %v450 = vadd.f32 %v418, %v434
        %v451 = vadd.f32 %v419, %v435
        %v452 = vadd.f32 %v420, %v436
        %v453 = vadd.f32 %v421, %v437
        %v454 = vadd.f32 %v422, %v438
        %v455 = vadd.f32 %v423, %v439
        %457 = vset.pattern.permute.xlu0 0
        %458 = vperm.xlu0 %457, %v373
        %v459 = vpop.permute.xlu0 %458
        %462 = vset.pattern.permute.xlu0 0
        %463 = vperm.xlu0 %462, %v374
        %v464 = vpop.permute.xlu0 %463
        %vm466 = vcmask 523264
        %v468 = vsel %vm466, %v371, 0
        %v471 = vsel %vm466, %v372, 0
        %473 = vmatprep.subr.mxu0 %v441
        %474 = vmatpush1.msra.mxu0 %v440
        %475 = vmatprep.subr.mxu0 %v443
        %476 = vmatpush1.msra.mxu0 %v442
        %477 = vmatprep.subr.mxu0 %v445
        %478 = vmatpush1.msra.mxu0 %v444
        %479 = vmatprep.subr.mxu0 %v447
        %480 = vmatpush1.msra.mxu0 %v446
        %481 = vmatprep.subr.mxu0 %v449
        %482 = vmatpush1.msra.mxu0 %v448
        %483 = vmatprep.subr.mxu0 %v451
        %484 = vmatpush1.msra.mxu0 %v450
        %485 = vmatprep.subr.mxu0 %v453
        %486 = vmatpush1.msra.mxu0 %v452
        %487 = vmatprep.subr.mxu0 %v455
        %488 = vmatpush1.msra.mxu0 %v454
        %489 = vmatprep.subr.mxu0 0.0
        %490 = vmatpush1.msra.mxu0 0.0
        %491 = vmatprep.subr.mxu0 0.0
        %492 = vmatpush1.msra.mxu0 0.0
        %493 = vmatprep.subr.mxu0 0.0
        %494 = vmatpush1.msra.mxu0 0.0
        %495 = vmatprep.subr.mxu0 0.0
        %496 = vmatpush1.msra.mxu0 0.0
        %497 = vmatprep.subr.mxu0 0.0
        %498 = vmatpush1.msra.mxu0 0.0
        %499 = vmatprep.subr.mxu0 0.0
        %500 = vmatpush1.msra.mxu0 0.0
        %501 = vmatprep.subr.mxu0 0.0
        %502 = vmatpush1.msra.mxu0 0.0
        %503 = vmatprep.subr.mxu0 0.0
        %504 = vmatpush1.msra.mxu0 0.0
        %505 = vmatprep.subr.mxu0 0.0
        %506 = vmatpush1.msra.mxu0 0.0
        %507 = vmatprep.subr.mxu0 0.0
        %508 = vmatpush1.msra.mxu0 0.0
        %509 = vmatprep.subr.mxu0 0.0
        %510 = vmatpush1.msra.mxu0 0.0
        %511 = vmatprep.subr.mxu0 0.0
        %512 = vmatpush1.msra.mxu0 0.0
        %513 = vmatprep.subr.mxu0 0.0
        %514 = vmatpush1.msra.mxu0 0.0
        %515 = vmatprep.subr.mxu0 0.0
        %516 = vmatpush1.msra.mxu0 0.0
        %517 = vmatprep.subr.mxu0 0.0
        %518 = vmatpush1.msra.mxu0 0.0
        %519 = vmatprep.subr.mxu0 0.0
        %520 = vmatpush1.msra.mxu0 0.0
        %521 = vmatprep.subr.mxu0 0.0
        %522 = vmatpush1.msra.mxu0 0.0
        %523 = vmatprep.subr.mxu0 0.0
        %524 = vmatpush1.msra.mxu0 0.0
        %525 = vmatprep.subr.mxu0 0.0
        %526 = vmatpush1.msra.mxu0 0.0
        %527 = vmatprep.subr.mxu0 0.0
        %528 = vmatpush1.msra.mxu0 0.0
        %529 = vmatprep.subr.mxu0 0.0
        %530 = vmatpush1.msra.mxu0 0.0
        %531 = vmatprep.subr.mxu0 0.0
        %532 = vmatpush1.msra.mxu0 0.0
        %533 = vmatprep.subr.mxu0 0.0
        %534 = vmatpush1.msra.mxu0 0.0
        %535 = vmatprep.subr.mxu0 0.0
        %536 = vmatpush1.msra.mxu0 0.0
        %537 = vmatprep.mubr.f32.mxu0 0.0
        %538 = vmatmul.mubr.f32.gmra.mrb[0].mxu0 %v468
        %v539 = vpop.f32.mrb[0].mxu0
        %v540 = vadd.f32 %v459, %v539
        %v541 = vpop.f32.mrb[0].mxu0
        %v542 = vadd.f32 %v459, %v541
        %543 = vmatprep.mubr.f32.mxu0 0.0
        %544 = vmatmul.mubr.f32.gmra.mrb[0].mxu0 %v471
        %v545 = vpop.f32.mrb[0].mxu0
        %v546 = vadd.f32 %v464, %v545
        %v547 = vpop.f32.mrb[0].mxu0
        %v548 = vadd.f32 %v464, %v547
        %549 = vdwg.mxu0
        %v550 = vmax.f32 %v540, 0.0
        %v551 = vmax.f32 %v542, 0.0
        %v552 = vmax.f32 %v546, 0.0
        %v553 = vmax.f32 %v548, 0.0
        %v554 = vadd.f32 %v440, %v441
        %555 = vadd.xlane.f32.xlu0 %v554
        %v556 = vpop.xlane.xlu0 %555
        %v557 = vadd.f32 %v442, %v443
        %558 = vadd.xlane.f32.xlu0 %v557
        %v559 = vpop.xlane.xlu0 %558
        %v560 = vadd.f32 %v444, %v445
        %561 = vadd.xlane.f32.xlu0 %v560
        %v562 = vpop.xlane.xlu0 %561
        %v563 = vadd.f32 %v446, %v447
        %564 = vadd.xlane.f32.xlu0 %v563
        %v565 = vpop.xlane.xlu0 %564
        %v566 = vadd.f32 %v448, %v449
        %567 = vadd.xlane.f32.xlu0 %v566
        %v568 = vpop.xlane.xlu0 %567
        %v569 = vadd.f32 %v450, %v451
        %570 = vadd.xlane.f32.xlu0 %v569
        %v571 = vpop.xlane.xlu0 %570
        %v572 = vadd.f32 %v452, %v453
        %573 = vadd.xlane.f32.xlu0 %v572
        %v574 = vpop.xlane.xlu0 %573
        %v575 = vadd.f32 %v454, %v455
        %576 = vadd.xlane.f32.xlu0 %v575
        %v577 = vpop.xlane.xlu0 %576
        %v578 = vmul.f32 %v556, 0.00390625
        %v579 = vmul.f32 %v559, 0.00390625
        %v580 = vmul.f32 %v562, 0.00390625
        %v581 = vmul.f32 %v565, 0.00390625
        %v582 = vmul.f32 %v568, 0.00390625
        %v583 = vmul.f32 %v571, 0.00390625
        %v584 = vmul.f32 %v574, 0.00390625
        %v585 = vmul.f32 %v577, 0.00390625
        %v586 = vmul.f32 %v383, %v578
        %v587 = vmul.f32 %v384, %v579
        %v588 = vmul.f32 %v385, %v580
        %v589 = vmul.f32 %v386, %v581
        %v590 = vmul.f32 %v387, %v582
        %v591 = vmul.f32 %v388, %v583
        %v592 = vmul.f32 %v389, %v584
        %v593 = vmul.f32 %v390, %v585
        %vm594 = vcmask 130048
        %v595 = vsel %vm594, %v586, 0.0
        %v596 = vsel %vm594, %v587, 0.0
        %v597 = vadd.f32 %v595, %v596
        %v598 = vsel %vm594, %v588, 0.0
        %v599 = vadd.f32 %v597, %v598
        %v600 = vsel %vm594, %v589, 0.0
        %v601 = vadd.f32 %v599, %v600
        %v602 = vsel %vm594, %v590, 0.0
        %v603 = vadd.f32 %v601, %v602
        %v604 = vsel %vm594, %v591, 0.0
        %v605 = vadd.f32 %v603, %v604
        %v606 = vsel %vm594, %v592, 0.0
        %v607 = vadd.f32 %v605, %v606
        %v608 = vsel %vm594, %v593, 0.0
        %v609 = vadd.f32 %v607, %v608
        %v610 = vrot.slane %v609, 4
        %v611 = vadd.f32 %v609, %v610
        %v612 = vrot.slane %v611, 2
        %v613 = vadd.f32 %v611, %v612
        %v614 = vrot.slane %v613, 1
        %v615 = vadd.f32 %v613, %v614
        %v616 = vadd.f32 %v615, %v391
        %v617 = vmax.f32 %v616, 0.0
        %v618 = vlaneseq
        %v619 = vshrl.u32 %v618, 7
        %v620 = vsub.s32 0, %v619
        %v621 = vrot.slane %v617, %v620
        %v622 = vmul.f32 %v392, %v621
        %v623 = vmul.f32 %v393, %v621
        %v624 = vmul.f32 %v394, %v621
        %v625 = vmul.f32 %v395, %v621
        %v626 = vmul.f32 %v396, %v621
        %v627 = vmul.f32 %v397, %v621
        %v628 = vmul.f32 %v398, %v621
        %v629 = vmul.f32 %v399, %v621
        %v630 = vsel %vm594, %v622, 0.0
        %631 = vadd.xlane.f32.xlu0 %v630
        %v632 = vpop.xlane.xlu0 %631
        %v633 = vsel %vm594, %v623, 0.0
        %634 = vadd.xlane.f32.xlu0 %v633
        %v635 = vpop.xlane.xlu0 %634
        %v636 = vsel %vm594, %v624, 0.0
        %637 = vadd.xlane.f32.xlu0 %v636
        %v638 = vpop.xlane.xlu0 %637
        %v639 = vsel %vm594, %v625, 0.0
        %640 = vadd.xlane.f32.xlu0 %v639
        %v641 = vpop.xlane.xlu0 %640
        %v642 = vsel %vm594, %v626, 0.0
        %643 = vadd.xlane.f32.xlu0 %v642
        %v644 = vpop.xlane.xlu0 %643
        %v645 = vsel %vm594, %v627, 0.0
        %646 = vadd.xlane.f32.xlu0 %v645
        %v647 = vpop.xlane.xlu0 %646
        %v648 = vsel %vm594, %v628, 0.0
        %649 = vadd.xlane.f32.xlu0 %v648
        %v650 = vpop.xlane.xlu0 %649
        %v651 = vsel %vm594, %v629, 0.0
        %652 = vadd.xlane.f32.xlu0 %v651
        %v653 = vpop.xlane.xlu0 %652
        %v654 = vadd.f32 %v632, %v400
        %v655 = vadd.f32 %v635, %v401
        %v656 = vadd.f32 %v638, %v402
        %v657 = vadd.f32 %v641, %v403
        %v658 = vadd.f32 %v644, %v404
        %v659 = vadd.f32 %v647, %v405
        %v660 = vadd.f32 %v650, %v406
        %v661 = vadd.f32 %v653, %v407
        %663 = vset.pattern.permute.xlu0 0
        %664 = vperm.xlu0 %663, %v654
        %v665 = vpop.permute.xlu0 %664
        %668 = vset.pattern.permute.xlu0 0
        %669 = vperm.xlu0 %668, %v655
        %v670 = vpop.permute.xlu0 %669
        %673 = vset.pattern.permute.xlu0 0
        %674 = vperm.xlu0 %673, %v656
        %v675 = vpop.permute.xlu0 %674
        %678 = vset.pattern.permute.xlu0 0
        %679 = vperm.xlu0 %678, %v657
        %v680 = vpop.permute.xlu0 %679
        %683 = vset.pattern.permute.xlu0 0
        %684 = vperm.xlu0 %683, %v658
        %v685 = vpop.permute.xlu0 %684
        %688 = vset.pattern.permute.xlu0 0
        %689 = vperm.xlu0 %688, %v659
        %v690 = vpop.permute.xlu0 %689
        %693 = vset.pattern.permute.xlu0 0
        %694 = vperm.xlu0 %693, %v660
        %v695 = vpop.permute.xlu0 %694
        %698 = vset.pattern.permute.xlu0 0
        %699 = vperm.xlu0 %698, %v661
        %v700 = vpop.permute.xlu0 %699
        %v703 = vsel %vm594, %v375, 0
        %v706 = vsel %vm594, %v376, 0
        %v709 = vsel %vm594, %v377, 0
        %v712 = vsel %vm594, %v378, 0
        %v715 = vsel %vm594, %v379, 0
        %v718 = vsel %vm594, %v380, 0
        %v721 = vsel %vm594, %v381, 0
        %v724 = vsel %vm594, %v382, 0
        %726 = vmatprep.subr.mxu0 %v551
        %727 = vmatpush1.msra.mxu0 %v550
        %728 = vmatprep.subr.mxu0 %v553
        %729 = vmatpush1.msra.mxu0 %v552
        %730 = vmatprep.subr.mxu0 0.0
        %731 = vmatpush1.msra.mxu0 0.0
        %732 = vmatprep.subr.mxu0 0.0
        %733 = vmatpush1.msra.mxu0 0.0
        %734 = vmatprep.subr.mxu0 0.0
        %735 = vmatpush1.msra.mxu0 0.0
        %736 = vmatprep.subr.mxu0 0.0
        %737 = vmatpush1.msra.mxu0 0.0
        %738 = vmatprep.subr.mxu0 0.0
        %739 = vmatpush1.msra.mxu0 0.0
        %740 = vmatprep.subr.mxu0 0.0
        %741 = vmatpush1.msra.mxu0 0.0
        %742 = vmatprep.subr.mxu0 0.0
        %743 = vmatpush1.msra.mxu0 0.0
        %744 = vmatprep.subr.mxu0 0.0
        %745 = vmatpush1.msra.mxu0 0.0
        %746 = vmatprep.subr.mxu0 0.0
        %747 = vmatpush1.msra.mxu0 0.0
        %748 = vmatprep.subr.mxu0 0.0
        %749 = vmatpush1.msra.mxu0 0.0
        %750 = vmatprep.subr.mxu0 0.0
        %751 = vmatpush1.msra.mxu0 0.0
        %752 = vmatprep.subr.mxu0 0.0
        %753 = vmatpush1.msra.mxu0 0.0
        %754 = vmatprep.subr.mxu0 0.0
        %755 = vmatpush1.msra.mxu0 0.0
        %756 = vmatprep.subr.mxu0 0.0
        %757 = vmatpush1.msra.mxu0 0.0
        %758 = vmatprep.subr.mxu0 0.0
        %759 = vmatpush1.msra.mxu0 0.0
        %760 = vmatprep.subr.mxu0 0.0
        %761 = vmatpush1.msra.mxu0 0.0
        %762 = vmatprep.subr.mxu0 0.0
        %763 = vmatpush1.msra.mxu0 0.0
        %764 = vmatprep.subr.mxu0 0.0
        %765 = vmatpush1.msra.mxu0 0.0
        %766 = vmatprep.subr.mxu0 0.0
        %767 = vmatpush1.msra.mxu0 0.0
        %768 = vmatprep.subr.mxu0 0.0
        %769 = vmatpush1.msra.mxu0 0.0
        %770 = vmatprep.subr.mxu0 0.0
        %771 = vmatpush1.msra.mxu0 0.0
        %772 = vmatprep.subr.mxu0 0.0
        %773 = vmatpush1.msra.mxu0 0.0
        %774 = vmatprep.subr.mxu0 0.0
        %775 = vmatpush1.msra.mxu0 0.0
        %776 = vmatprep.subr.mxu0 0.0
        %777 = vmatpush1.msra.mxu0 0.0
        %778 = vmatprep.subr.mxu0 0.0
        %779 = vmatpush1.msra.mxu0 0.0
        %780 = vmatprep.subr.mxu0 0.0
        %781 = vmatpush1.msra.mxu0 0.0
        %782 = vmatprep.subr.mxu0 0.0
        %783 = vmatpush1.msra.mxu0 0.0
        %784 = vmatprep.subr.mxu0 0.0
        %785 = vmatpush1.msra.mxu0 0.0
        %786 = vmatprep.subr.mxu0 0.0
        %787 = vmatpush1.msra.mxu0 0.0
        %788 = vmatprep.subr.mxu0 0.0
        %789 = vmatpush1.msra.mxu0 0.0
        %790 = vmatprep.mubr.f32.mxu0 0.0
        %791 = vmatmul.mubr.f32.gmra.mrb[0].mxu0 %v703
        %v792 = vpop.f32.mrb[0].mxu0
        %v793 = vadd.f32 %v665, %v792
        %v794 = vpop.f32.mrb[0].mxu0
        %v795 = vadd.f32 %v665, %v794
        %796 = vmatprep.mubr.f32.mxu0 0.0
        %797 = vmatmul.mubr.f32.gmra.mrb[0].mxu0 %v706
        %v798 = vpop.f32.mrb[0].mxu0
        %v799 = vadd.f32 %v670, %v798
        %v800 = vpop.f32.mrb[0].mxu0
        %v801 = vadd.f32 %v670, %v800
        %802 = vmatprep.mubr.f32.mxu0 0.0
        %803 = vmatmul.mubr.f32.gmra.mrb[0].mxu0 %v709
        %v804 = vpop.f32.mrb[0].mxu0
        %v805 = vadd.f32 %v675, %v804
        %v806 = vpop.f32.mrb[0].mxu0
        %v807 = vadd.f32 %v675, %v806
        %808 = vmatprep.mubr.f32.mxu0 0.0
        %809 = vmatmul.mubr.f32.gmra.mrb[0].mxu0 %v712
        %v810 = vpop.f32.mrb[0].mxu0
        %v811 = vadd.f32 %v680, %v810
        %v812 = vpop.f32.mrb[0].mxu0
        %v813 = vadd.f32 %v680, %v812
        %814 = vmatprep.mubr.f32.mxu0 0.0
        %815 = vmatmul.mubr.f32.gmra.mrb[0].mxu0 %v715
        %v816 = vpop.f32.mrb[0].mxu0
        %v817 = vadd.f32 %v685, %v816
        %v818 = vpop.f32.mrb[0].mxu0
        %v819 = vadd.f32 %v685, %v818
        %820 = vmatprep.mubr.f32.mxu0 0.0
        %821 = vmatmul.mubr.f32.gmra.mrb[0].mxu0 %v718
        %v822 = vpop.f32.mrb[0].mxu0
        %v823 = vadd.f32 %v690, %v822
        %v824 = vpop.f32.mrb[0].mxu0
        %v825 = vadd.f32 %v690, %v824
        %826 = vmatprep.mubr.f32.mxu0 0.0
        %827 = vmatmul.mubr.f32.gmra.mrb[0].mxu0 %v721
        %v828 = vpop.f32.mrb[0].mxu0
        %v829 = vadd.f32 %v695, %v828
        %v830 = vpop.f32.mrb[0].mxu0
        %v831 = vadd.f32 %v695, %v830
        %832 = vmatprep.mubr.f32.mxu0 0.0
        %833 = vmatmul.mubr.f32.gmra.mrb[0].mxu0 %v724
        %v834 = vpop.f32.mrb[0].mxu0
        %v835 = vadd.f32 %v700, %v834
        %v836 = vpop.f32.mrb[0].mxu0
        %v837 = vadd.f32 %v700, %v836
        %838 = vdwg.mxu0
        %v839 = vmul.f32 %v793, 0.5
        %v840 = vmul.f32 %v795, 0.5
        %v841 = vmul.f32 %v799, 0.5
        %v842 = vmul.f32 %v801, 0.5
        %v843 = vmul.f32 %v805, 0.5
        %v844 = vmul.f32 %v807, 0.5
        %v845 = vmul.f32 %v811, 0.5
        %v846 = vmul.f32 %v813, 0.5
        %v847 = vmul.f32 %v817, 0.5
        %v848 = vmul.f32 %v819, 0.5
        %v849 = vmul.f32 %v823, 0.5
        %v850 = vmul.f32 %v825, 0.5
        %v851 = vmul.f32 %v829, 0.5
        %v852 = vmul.f32 %v831, 0.5
        %v853 = vmul.f32 %v835, 0.5
        %v854 = vmul.f32 %v837, 0.5
        %v855 = vtanh.pop %v839
        %v856 = vtanh.pop %v840
        %v857 = vtanh.pop %v841
        %v858 = vtanh.pop %v842
        %v859 = vtanh.pop %v843
        %v860 = vtanh.pop %v844
        %v861 = vtanh.pop %v845
        %v862 = vtanh.pop %v846
        %v863 = vtanh.pop %v847
        %v864 = vtanh.pop %v848
        %v865 = vtanh.pop %v849
        %v866 = vtanh.pop %v850
        %v867 = vtanh.pop %v851
        %v868 = vtanh.pop %v852
        %v869 = vtanh.pop %v853
        %v870 = vtanh.pop %v854
        %v871 = vmul.f32 %v855, 0.5
        %v872 = vmul.f32 %v856, 0.5
        %v873 = vmul.f32 %v857, 0.5
        %v874 = vmul.f32 %v858, 0.5
        %v875 = vmul.f32 %v859, 0.5
        %v876 = vmul.f32 %v860, 0.5
        %v877 = vmul.f32 %v861, 0.5
        %v878 = vmul.f32 %v862, 0.5
        %v879 = vmul.f32 %v863, 0.5
        %v880 = vmul.f32 %v864, 0.5
        %v881 = vmul.f32 %v865, 0.5
        %v882 = vmul.f32 %v866, 0.5
        %v883 = vmul.f32 %v867, 0.5
        %v884 = vmul.f32 %v868, 0.5
        %v885 = vmul.f32 %v869, 0.5
        %v886 = vmul.f32 %v870, 0.5
        %v887 = vadd.f32 %v871, 0.5
        %v888 = vadd.f32 %v872, 0.5
        %v889 = vadd.f32 %v873, 0.5
        %v890 = vadd.f32 %v874, 0.5
        %v891 = vadd.f32 %v875, 0.5
        %v892 = vadd.f32 %v876, 0.5
        %v893 = vadd.f32 %v877, 0.5
        %v894 = vadd.f32 %v878, 0.5
        %v895 = vadd.f32 %v879, 0.5
        %v896 = vadd.f32 %v880, 0.5
        %v897 = vadd.f32 %v881, 0.5
        %v898 = vadd.f32 %v882, 0.5
        %v899 = vadd.f32 %v883, 0.5
        %v900 = vadd.f32 %v884, 0.5
        %v901 = vadd.f32 %v885, 0.5
        %v902 = vadd.f32 %v886, 0.5
        %v903 = vsub.f32 %v408, %v424
        %v904 = vsub.f32 %v409, %v425
        %v905 = vsub.f32 %v410, %v426
        %v906 = vsub.f32 %v411, %v427
        %v907 = vsub.f32 %v412, %v428
        %v908 = vsub.f32 %v413, %v429
        %v909 = vsub.f32 %v414, %v430
        %v910 = vsub.f32 %v415, %v431
        %v911 = vsub.f32 %v416, %v432
        %v912 = vsub.f32 %v417, %v433
        %v913 = vsub.f32 %v418, %v434
        %v914 = vsub.f32 %v419, %v435
        %v915 = vsub.f32 %v420, %v436
        %v916 = vsub.f32 %v421, %v437
        %v917 = vsub.f32 %v422, %v438
        %v918 = vsub.f32 %v423, %v439
        %v919 = vmul.f32 %v903, %v887
        %v920 = vmul.f32 %v904, %v888
        %v921 = vmul.f32 %v905, %v889
        %v922 = vmul.f32 %v906, %v890
        %v923 = vmul.f32 %v907, %v891
        %v924 = vmul.f32 %v908, %v892
        %v925 = vmul.f32 %v909, %v893
        %v926 = vmul.f32 %v910, %v894
        %v927 = vmul.f32 %v911, %v895
        %v928 = vmul.f32 %v912, %v896
        %v929 = vmul.f32 %v913, %v897
        %v930 = vmul.f32 %v914, %v898
        %v931 = vmul.f32 %v915, %v899
        %v932 = vmul.f32 %v916, %v900
        %v933 = vmul.f32 %v917, %v901
        %v934 = vmul.f32 %v918, %v902
        %v935 = vadd.f32 %v424, %v919
        %v936 = vadd.f32 %v425, %v920
        %v937 = vadd.f32 %v426, %v921
        %v938 = vadd.f32 %v427, %v922
        %v939 = vadd.f32 %v428, %v923
        %v940 = vadd.f32 %v429, %v924
        %v941 = vadd.f32 %v430, %v925
        %v942 = vadd.f32 %v431, %v926
        %v943 = vadd.f32 %v432, %v927
        %v944 = vadd.f32 %v433, %v928
        %v945 = vadd.f32 %v434, %v929
        %v946 = vadd.f32 %v435, %v930
        %v947 = vadd.f32 %v436, %v931
        %v948 = vadd.f32 %v437, %v932
        %v949 = vadd.f32 %v438, %v933
        %v950 = vadd.f32 %v439, %v934
        %v951 = vmul.f32 %v935, 2.0
        %v952 = vmul.f32 %v936, 2.0
        %v953 = vmul.f32 %v937, 2.0
        %v954 = vmul.f32 %v938, 2.0
        %v955 = vmul.f32 %v939, 2.0
        %v956 = vmul.f32 %v940, 2.0
        %v957 = vmul.f32 %v941, 2.0
        %v958 = vmul.f32 %v942, 2.0
        %v959 = vmul.f32 %v943, 2.0
        %v960 = vmul.f32 %v944, 2.0
        %v961 = vmul.f32 %v945, 2.0
        %v962 = vmul.f32 %v946, 2.0
        %v963 = vmul.f32 %v947, 2.0
        %v964 = vmul.f32 %v948, 2.0
        %v965 = vmul.f32 %v949, 2.0
        %v966 = vmul.f32 %v950, 2.0
        %967 = vst [vmem:[%s365] sm:$0xff] %v951
        %968 = vst [vmem:[%s365 + $0x8] sm:$0xff] %v952
        %969 = vst [vmem:[%s365 + $0x10] sm:$0xff] %v953
        %970 = vst [vmem:[%s365 + $0x18] sm:$0xff] %v954
        %971 = vst [vmem:[%s365 + $0x20] sm:$0xff] %v955
        %972 = vst [vmem:[%s365 + $0x28] sm:$0xff] %v956
        %973 = vst [vmem:[%s365 + $0x30] sm:$0xff] %v957
        %974 = vst [vmem:[%s365 + $0x38] sm:$0xff] %v958
        %975 = vst [vmem:[%s365 + $0x40] sm:$0xff] %v959
        %976 = vst [vmem:[%s365 + $0x48] sm:$0xff] %v960
        %977 = vst [vmem:[%s365 + $0x50] sm:$0xff] %v961
        %978 = vst [vmem:[%s365 + $0x58] sm:$0xff] %v962
        %979 = vst [vmem:[%s365 + $0x60] sm:$0xff] %v963
        %980 = vst [vmem:[%s365 + $0x68] sm:$0xff] %v964
        %981 = vst [vmem:[%s365 + $0x70] sm:$0xff] %v965
        %982 = vst [vmem:[%s365 + $0x78] sm:$0xff] %v966
        %s983 = sand.u32 %s233, 1
        %s984 = scalar_lea.sflag [#allocation4], %s983
        %s985 = sand.u32 %s233, 1
        %s986 = smul.addr %s985, 128
        %s987 = scalar_lea.vmem [#allocation5], %s986
        // Predicated region
        $region61: #{tpu_custom_call.1} parent=55 // pred_check
          %p988 = pneg %p243
        $region62: #{tpu_custom_call.1} parent=55 // pred_check_branch
          %990 = sbr.rel (%p988) target = $region64
        $region63: #{tpu_custom_call.1} parent=55 // pred_region
          %s992 = ssub.s32 2048, 2048
          %993 = vsyncadd %s984, %s992
          %s994 = smul.addr %s26, 16
          %s995 = smul.addr %s994, 128
          %s996 = scalar_lea.hbm %s9, %s995
          %s997 = sshll.u32 %s987, 4
          %s998 = int_to_ptr.vmem [resolvable:$true] %s997
          %1003 = dma.vmem_to_hbm [thread:$0]  %s998, 2048, %s996, %s984, 256, 256, 16
        $region64: #{tpu_custom_call.1} parent=55 // pred_fallthru
          _
      $region56: #{tpu_custom_call.1} parent=5 // pred_fallthru
        _
      %p1004 = scmp.le.s32.totalorder 2, %s21
      // Predicated region
      $region65: #{tpu_custom_call.1} parent=5 // pred_check
        %p1005 = pneg %p1004
      $region66: #{tpu_custom_call.1} parent=5 // pred_check_branch
        %1007 = sbr.rel (%p1005) target = $region68
      $region67: #{tpu_custom_call.1} parent=5 // pred_region
        %s1008 = ssub.s32 %s21, 2
        // Predicated region
        $region69: #{tpu_custom_call.1} parent=67 // pred_check
          %p1009 = pneg %p249
        $region70: #{tpu_custom_call.1} parent=67 // pred_check_branch
          %1011 = sbr.rel (%p1009) target = $region72
        $region71: #{tpu_custom_call.1} parent=67 // pred_region
          %s1012 = sand.u32 %s234, 1
          %s1013 = scalar_lea.sflag [#allocation4], %s1012
          %s1014 = sand.u32 %s234, 1
          %s1015 = smul.addr %s1014, 128
          %s1016 = scalar_lea.vmem [#allocation5], %s1015
          %1017 = dma.done %s1013, 2048
        $region72: #{tpu_custom_call.1} parent=67 // pred_fallthru
          _
      $region68: #{tpu_custom_call.1} parent=5 // pred_fallthru
        _
    $region6: #{tpu_custom_call.1} parent=1 // loop_footer
      %s25 = sadd.s32 1, %s21
    $region7: #{tpu_custom_call.1} parent=1 // loop_footer_branch
      %20 = sbr.rel target = $region3
    $region8: #{tpu_custom_call.1} parent=1 // loop_exit
      _
    %1018 = vsyncpa [#allocation3], 1
    %s1019 = scalar_lea.sflag [#allocation3], 1
    %1020 = vsyncpa %s1019, 1
    %1021 = vsyncpa [#allocation4], 1
    %s1022 = scalar_lea.sflag [#allocation4], 1
    %1023 = vsyncpa %s1022, 1

</llo_original>
